<compile_context>
chip_gen: v7x
topology: tpu7x:2x2x1
jax: 0.10.0
libtpu: 0.0.40
codegen_flags: <defaults>
</compile_context>

<pallas_src>
import jax
import jax.numpy as jnp
from jax.experimental import pallas as pl
from jax.experimental.pallas import tpu as pltpu


_LANE = 128          # vreg lane width / MXU-friendly feature granularity
_BATCH_ALIGN = 16    # bf16 sublane packing for the batch (sublane) dim


def _round_up(x, m):
    return ((x + m - 1) // m) * m


def _make_clean_mlp_kernel(n_act_layers, negative_slope):
    """[Linear + LeakyReLU(negative_slope)] x n_act_layers -> Linear (no act).

    Matmul inputs are bf16 (MXU-native rate); accumulation, bias add and the
    activation run in f32 on the VPU (avoids bf16 pack/unpack on v5e)."""

    def kernel(*refs):
        x_ref = refs[0]
        out_ref = refs[-1]
        p = refs[1:-1]  # alternating (w_bf16, b_f32) refs

        h = x_ref[...]  # bf16 (block_b, d_in_padded)

        for li in range(n_act_layers):
            w = p[2 * li][...]       # bf16 (in_p, out_p)
            b = p[2 * li + 1][...]   # f32  (1, out_p)
            a = jnp.dot(h, w, preferred_element_type=jnp.float32) + b
            a = jnp.where(a >= 0.0, a, negative_slope * a)   # LeakyReLU (0.0 -> ReLU)
            h = a.astype(jnp.bfloat16)

        # final Linear, no activation; f32, lane-dense (padded) output store
        out_ref[...] = (
            jnp.dot(h, p[-2][...], preferred_element_type=jnp.float32) + p[-1][...]
        )

    return kernel


def clean_mlp_forward_pallas(x, params, *, negative_slope=0.2, block_b=None):
    """x: (B, input_size) f32.
    params: list of (W, b), W: (in, out) f32 (already transposed vs torch),
    b: (out,) or (1, out) f32, ordered [Linear+act, ..., Linear+act, Linear].
    Returns (B, output_size) f32."""
    B, d_in = x.shape
    n_layers = len(params)
    assert n_layers >= 1
    n_act_layers = n_layers - 1
    out_dim = params[-1][0].shape[1]

    # ---- pad all feature dims to 128-lane multiples (zero padding is exact:
    #      pad bias = 0, lrelu(0) = 0, next layer's pad rows are 0) ----
    dims = [d_in] + [w.shape[1] for w, _ in params]
    dims_p = [_round_up(d, _LANE) for d in dims]

    padded = []
    for li, (w, b) in enumerate(params):
        b = jnp.reshape(b, (1, -1))
        in_p, out_p = dims_p[li], dims_p[li + 1]
        w_p = jnp.zeros((in_p, out_p), jnp.float32)
        w_p = w_p.at[: w.shape[0], : w.shape[1]].set(w)
        b_p = jnp.zeros((1, out_p), jnp.float32)
        b_p = b_p.at[:, : b.shape[1]].set(b)
        padded.append((w_p.astype(jnp.bfloat16), b_p))  # weights bf16, bias f32

    # ---- batch tiling: multiple of 16 (bf16 sublanes), <=512 rows,
    #      >=2 grid steps whenever the batch allows (v7x 2-TC sharding) ----
    if block_b is None:
        if B <= _BATCH_ALIGN:
            block_b = _BATCH_ALIGN
        else:
            block_b = min(512, _round_up(-(-B // 2), _BATCH_ALIGN))
    B_p = _round_up(B, block_b)

    x_p = jnp.zeros((B_p, dims_p[0]), jnp.float32)
    x_p = x_p.at[:B, :d_in].set(x).astype(jnp.bfloat16)

    kernel = _make_clean_mlp_kernel(n_act_layers, float(negative_slope))

    in_specs = [pl.BlockSpec((block_b, dims_p[0]), lambda i: (i, 0))]
    flat_params = []
    for w_p, b_p in padded:
        # grid-invariant full-array blocks: DMA'd once, resident across the grid
        in_specs.append(pl.BlockSpec(w_p.shape, lambda i: (0, 0)))
        in_specs.append(pl.BlockSpec(b_p.shape, lambda i: (0, 0)))
        flat_params.extend([w_p, b_p])

    out_spec = pl.BlockSpec((block_b, dims_p[-1]), lambda i: (i, 0))

    out = pl.pallas_call(
        kernel,
        out_shape=jax.ShapeDtypeStruct((B_p, dims_p[-1]), jnp.float32),
        grid_spec=pltpu.PrefetchScalarGridSpec(
            num_scalar_prefetch=0,
            grid=(B_p // block_b,),
            in_specs=in_specs,
            out_specs=out_spec,
        ),
        compiler_params=pltpu.CompilerParams(
            dimension_semantics=("parallel",),
            vmem_limit_bytes=64 * 1024 * 1024,
        ),
    )(x_p, *flat_params)

    return out[:B, :out_dim]


def clean_mlp_reference(x, params, *, negative_slope=0.2):
    """Pure-JAX reference mirroring the kernel's bf16 quantization of matmul
    inputs (f32 accumulation, f32 bias/activation)."""
    h = x.astype(jnp.bfloat16).astype(jnp.float32)
    for li, (w, b) in enumerate(params):
        wq = w.astype(jnp.bfloat16).astype(jnp.float32)
        h = h @ wq + jnp.reshape(b, (1, -1))
        if li != len(params) - 1:
            h = jnp.where(h >= 0.0, h, negative_slope * h)
            h = h.astype(jnp.bfloat16).astype(jnp.float32)
    return h


if __name__ == "__main__":
    # CleanMLP(input_size=16, hidden_size=32, n_hidden=3, output_size=1,
    #          activation='lrelu', batch_norm=False)
    input_size = 16
    hidden_size = 32
    n_hidden = 3
    output_size = 1
    negative_slope = 0.2   # LeakyReLU(0.2) -- module default
    batch = 32             # -> two 16-row grid steps (pipelined / 2-TC parallel)

    key = jax.random.PRNGKey(0)
    keys = jax.random.split(key, n_hidden + 2)

    def init_linear(k, fan_in, fan_out):
        # torch.nn.Linear default init: U(-1/sqrt(fan_in), 1/sqrt(fan_in))
        kw, kb = jax.random.split(k)
        bound = 1.0 / jnp.sqrt(jnp.float32(fan_in))
        w = jax.random.uniform(kw, (fan_in, fan_out), jnp.float32, -bound, bound)
        b = jax.random.uniform(kb, (1, fan_out), jnp.float32, -bound, bound)
        return w, b

    params = [init_linear(keys[0], input_size, hidden_size)]
    for i in range(1, n_hidden):
        params.append(init_linear(keys[i], hidden_size, hidden_size))
    params.append(init_linear(keys[n_hidden], hidden_size, output_size))

    x = jax.random.normal(keys[-1], (batch, input_size), jnp.float32)

    out = clean_mlp_forward_pallas(x, params, negative_slope=negative_slope)
    out = jax.block_until_ready(out)

    ref = clean_mlp_reference(x, params, negative_slope=negative_slope)
    assert out.shape == (batch, output_size)
    max_err = jnp.max(jnp.abs(out - ref))
    assert jnp.allclose(out, ref, atol=1e-2, rtol=1e-2), (
        f"mismatch vs reference: max abs err = {max_err}"
    )

    print("KERNEL_OK")
</pallas_src>

<mosaic_0001>
module attributes {stable_mosaic.version = 11 : i64} {
  func.func @kernel(%arg0: i32, %arg1: memref<16x128xbf16, #tpu.memory_space<vmem>>, %arg2: memref<128x128xbf16, #tpu.memory_space<vmem>>, %arg3: memref<1x128xf32, #tpu.memory_space<vmem>>, %arg4: memref<128x128xbf16, #tpu.memory_space<vmem>>, %arg5: memref<1x128xf32, #tpu.memory_space<vmem>>, %arg6: memref<128x128xbf16, #tpu.memory_space<vmem>>, %arg7: memref<1x128xf32, #tpu.memory_space<vmem>>, %arg8: memref<128x128xbf16, #tpu.memory_space<vmem>>, %arg9: memref<1x128xf32, #tpu.memory_space<vmem>>, %arg10: memref<16x128xf32, #tpu.memory_space<vmem>>) attributes {dimension_semantics = [#tpu.dimension_semantics<parallel>], iteration_bounds = array<i64: 2>, scalar_prefetch = 0 : i64, scratch_operands = 0 : i64, tpu.core_type = #tpu.core_type<tc>, window_params = [{transform_indices = @transform_0, window_bounds = array<i64: 16, 128>}, {pipeline_mode = #tpu.pipeline_mode<synchronous>, transform_indices = @transform_1, window_bounds = array<i64: 128, 128>}, {pipeline_mode = #tpu.pipeline_mode<synchronous>, transform_indices = @transform_2, window_bounds = array<i64: 1, 128>}, {pipeline_mode = #tpu.pipeline_mode<synchronous>, transform_indices = @transform_3, window_bounds = array<i64: 128, 128>}, {pipeline_mode = #tpu.pipeline_mode<synchronous>, transform_indices = @transform_4, window_bounds = array<i64: 1, 128>}, {pipeline_mode = #tpu.pipeline_mode<synchronous>, transform_indices = @transform_5, window_bounds = array<i64: 128, 128>}, {pipeline_mode = #tpu.pipeline_mode<synchronous>, transform_indices = @transform_6, window_bounds = array<i64: 1, 128>}, {pipeline_mode = #tpu.pipeline_mode<synchronous>, transform_indices = @transform_7, window_bounds = array<i64: 128, 128>}, {pipeline_mode = #tpu.pipeline_mode<synchronous>, transform_indices = @transform_8, window_bounds = array<i64: 1, 128>}, {transform_indices = @transform_9, window_bounds = array<i64: 16, 128>}]} {
    %c0 = arith.constant 0 : index
    %c0_0 = arith.constant 0 : index
    %0 = vector.load %arg1[%c0, %c0_0] : memref<16x128xbf16, #tpu.memory_space<vmem>>, vector<16x128xbf16>
    %c0_1 = arith.constant 0 : index
    %c0_2 = arith.constant 0 : index
    %1 = vector.load %arg2[%c0_1, %c0_2] : memref<128x128xbf16, #tpu.memory_space<vmem>>, vector<128x128xbf16>
    %c0_3 = arith.constant 0 : index
    %c0_4 = arith.constant 0 : index
    %2 = vector.load %arg3[%c0_3, %c0_4] : memref<1x128xf32, #tpu.memory_space<vmem>>, vector<1x128xf32>
    %cst = arith.constant dense<0.000000e+00> : vector<16x128xf32>
    %3 = tpu.matmul %0, %1, %cst {dimension_numbers = #tpu.dot_dimension_numbers<[1], [0], [0], [1], [0, 0, 1, 1], [], []>} : vector<16x128xbf16>, vector<128x128xbf16>, vector<16x128xf32> -> vector<16x128xf32>
    %4 = vector.broadcast %2 : vector<1x128xf32> to vector<16x128xf32>
    %5 = arith.addf %3, %4 : vector<16x128xf32>
    %cst_5 = arith.constant 0.000000e+00 : f32
    %6 = vector.broadcast %cst_5 : f32 to vector<16x128xf32>
    %7 = arith.cmpf oge, %5, %6 : vector<16x128xf32>
    %cst_6 = arith.constant 2.000000e-01 : f32
    %8 = vector.broadcast %cst_6 : f32 to vector<16x128xf32>
    %9 = arith.mulf %8, %5 : vector<16x128xf32>
    %10 = arith.select %7, %5, %9 : vector<16x128xi1>, vector<16x128xf32>
    %11 = arith.truncf %10 : vector<16x128xf32> to vector<16x128xbf16>
    %c0_7 = arith.constant 0 : index
    %c0_8 = arith.constant 0 : index
    %12 = vector.load %arg4[%c0_7, %c0_8] : memref<128x128xbf16, #tpu.memory_space<vmem>>, vector<128x128xbf16>
    %c0_9 = arith.constant 0 : index
    %c0_10 = arith.constant 0 : index
    %13 = vector.load %arg5[%c0_9, %c0_10] : memref<1x128xf32, #tpu.memory_space<vmem>>, vector<1x128xf32>
    %cst_11 = arith.constant dense<0.000000e+00> : vector<16x128xf32>
    %14 = tpu.matmul %11, %12, %cst_11 {dimension_numbers = #tpu.dot_dimension_numbers<[1], [0], [0], [1], [0, 0, 1, 1], [], []>} : vector<16x128xbf16>, vector<128x128xbf16>, vector<16x128xf32> -> vector<16x128xf32>
    %15 = vector.broadcast %13 : vector<1x128xf32> to vector<16x128xf32>
    %16 = arith.addf %14, %15 : vector<16x128xf32>
    %cst_12 = arith.constant 0.000000e+00 : f32
    %17 = vector.broadcast %cst_12 : f32 to vector<16x128xf32>
    %18 = arith.cmpf oge, %16, %17 : vector<16x128xf32>
    %cst_13 = arith.constant 2.000000e-01 : f32
    %19 = vector.broadcast %cst_13 : f32 to vector<16x128xf32>
    %20 = arith.mulf %19, %16 : vector<16x128xf32>
    %21 = arith.select %18, %16, %20 : vector<16x128xi1>, vector<16x128xf32>
    %22 = arith.truncf %21 : vector<16x128xf32> to vector<16x128xbf16>
    %c0_14 = arith.constant 0 : index
    %c0_15 = arith.constant 0 : index
    %23 = vector.load %arg6[%c0_14, %c0_15] : memref<128x128xbf16, #tpu.memory_space<vmem>>, vector<128x128xbf16>
    %c0_16 = arith.constant 0 : index
    %c0_17 = arith.constant 0 : index
    %24 = vector.load %arg7[%c0_16, %c0_17] : memref<1x128xf32, #tpu.memory_space<vmem>>, vector<1x128xf32>
    %cst_18 = arith.constant dense<0.000000e+00> : vector<16x128xf32>
    %25 = tpu.matmul %22, %23, %cst_18 {dimension_numbers = #tpu.dot_dimension_numbers<[1], [0], [0], [1], [0, 0, 1, 1], [], []>} : vector<16x128xbf16>, vector<128x128xbf16>, vector<16x128xf32> -> vector<16x128xf32>
    %26 = vector.broadcast %24 : vector<1x128xf32> to vector<16x128xf32>
    %27 = arith.addf %25, %26 : vector<16x128xf32>
    %cst_19 = arith.constant 0.000000e+00 : f32
    %28 = vector.broadcast %cst_19 : f32 to vector<16x128xf32>
    %29 = arith.cmpf oge, %27, %28 : vector<16x128xf32>
    %cst_20 = arith.constant 2.000000e-01 : f32
    %30 = vector.broadcast %cst_20 : f32 to vector<16x128xf32>
    %31 = arith.mulf %30, %27 : vector<16x128xf32>
    %32 = arith.select %29, %27, %31 : vector<16x128xi1>, vector<16x128xf32>
    %33 = arith.truncf %32 : vector<16x128xf32> to vector<16x128xbf16>
    %c0_21 = arith.constant 0 : index
    %c0_22 = arith.constant 0 : index
    %34 = vector.load %arg8[%c0_21, %c0_22] : memref<128x128xbf16, #tpu.memory_space<vmem>>, vector<128x128xbf16>
    %cst_23 = arith.constant dense<0.000000e+00> : vector<16x128xf32>
    %35 = tpu.matmul %33, %34, %cst_23 {dimension_numbers = #tpu.dot_dimension_numbers<[1], [0], [0], [1], [0, 0, 1, 1], [], []>} : vector<16x128xbf16>, vector<128x128xbf16>, vector<16x128xf32> -> vector<16x128xf32>
    %c0_24 = arith.constant 0 : index
    %c0_25 = arith.constant 0 : index
    %36 = vector.load %arg9[%c0_24, %c0_25] : memref<1x128xf32, #tpu.memory_space<vmem>>, vector<1x128xf32>
    %37 = vector.broadcast %36 : vector<1x128xf32> to vector<16x128xf32>
    %38 = arith.addf %35, %37 : vector<16x128xf32>
    %c0_26 = arith.constant 0 : index
    %c0_27 = arith.constant 0 : index
    %39 = vector.load %arg10[%c0_26, %c0_27] : memref<16x128xf32, #tpu.memory_space<vmem>>, vector<16x128xf32>
    tpu.vector_store %arg10[%c0_26, %c0_27], %38 {strides = array<i32>} : memref<16x128xf32, #tpu.memory_space<vmem>>, vector<16x128xf32>,
    return
  }
  func.func @transform_0(%arg0: i32) -> (i32, i32) {
    %c0_i32 = arith.constant 0 : i32
    %c0_i32_0 = arith.constant 0 : i32
    return %arg0, %c0_i32 : i32, i32
  }
  func.func @transform_1(%arg0: i32) -> (i32, i32) {
    %c0_i32 = arith.constant 0 : i32
    %c0_i32_0 = arith.constant 0 : i32
    %c0_i32_1 = arith.constant 0 : i32
    return %c0_i32, %c0_i32_0 : i32, i32
  }
  func.func @transform_2(%arg0: i32) -> (i32, i32) {
    %c0_i32 = arith.constant 0 : i32
    %c0_i32_0 = arith.constant 0 : i32
    %c0_i32_1 = arith.constant 0 : i32
    return %c0_i32, %c0_i32_0 : i32, i32
  }
  func.func @transform_3(%arg0: i32) -> (i32, i32) {
    %c0_i32 = arith.constant 0 : i32
    %c0_i32_0 = arith.constant 0 : i32
    %c0_i32_1 = arith.constant 0 : i32
    return %c0_i32, %c0_i32_0 : i32, i32
  }
  func.func @transform_4(%arg0: i32) -> (i32, i32) {
    %c0_i32 = arith.constant 0 : i32
    %c0_i32_0 = arith.constant 0 : i32
    %c0_i32_1 = arith.constant 0 : i32
    return %c0_i32, %c0_i32_0 : i32, i32
  }
  func.func @transform_5(%arg0: i32) -> (i32, i32) {
    %c0_i32 = arith.constant 0 : i32
    %c0_i32_0 = arith.constant 0 : i32
    %c0_i32_1 = arith.constant 0 : i32
    return %c0_i32, %c0_i32_0 : i32, i32
  }
  func.func @transform_6(%arg0: i32) -> (i32, i32) {
    %c0_i32 = arith.constant 0 : i32
    %c0_i32_0 = arith.constant 0 : i32
    %c0_i32_1 = arith.constant 0 : i32
    return %c0_i32, %c0_i32_0 : i32, i32
  }
  func.func @transform_7(%arg0: i32) -> (i32, i32) {
    %c0_i32 = arith.constant 0 : i32
    %c0_i32_0 = arith.constant 0 : i32
    %c0_i32_1 = arith.constant 0 : i32
    return %c0_i32, %c0_i32_0 : i32, i32
  }
  func.func @transform_8(%arg0: i32) -> (i32, i32) {
    %c0_i32 = arith.constant 0 : i32
    %c0_i32_0 = arith.constant 0 : i32
    %c0_i32_1 = arith.constant 0 : i32
    return %c0_i32, %c0_i32_0 : i32, i32
  }
  func.func @transform_9(%arg0: i32) -> (i32, i32) {
    %c0_i32 = arith.constant 0 : i32
    %c0_i32_0 = arith.constant 0 : i32
    return %arg0, %c0_i32 : i32, i32
  }
}

</mosaic_0001>

<llo_original>
// kernel: tpu_custom_call.1
$region0: #{tpu_custom_call.1}
  #allocation0 [shape = 'u32[]', space=smem, size = 0x4, offset = 0x4, fixed_abs, tag = 'smem constant byte address 0x4 - core index']
  #allocation1 [shape = 'u32[144,128]{1,0:T(1,128)}', space=vmem, size = 0x12000, scoped, tag = 'internal scratch']
  %s0 = inlined_call_operand.hbm [shape: bf16[32,128], index: 0, kind: input, shape index: {}]
  %s1 = inlined_call_operand.hbm [shape: bf16[128,128], index: 1, kind: input, shape index: {}]
  %s2 = inlined_call_operand.hbm [shape: f32[1,128], index: 2, kind: input, shape index: {}]
  %s3 = inlined_call_operand.hbm [shape: bf16[128,128], index: 3, kind: input, shape index: {}]
  %s4 = inlined_call_operand.hbm [shape: f32[1,128], index: 4, kind: input, shape index: {}]
  %s5 = inlined_call_operand.hbm [shape: bf16[128,128], index: 5, kind: input, shape index: {}]
  %s6 = inlined_call_operand.hbm [shape: f32[1,128], index: 6, kind: input, shape index: {}]
  %s7 = inlined_call_operand.hbm [shape: bf16[128,128], index: 7, kind: input, shape index: {}]
  %s8 = inlined_call_operand.hbm [shape: f32[1,128], index: 8, kind: input, shape index: {}]
  %s9 = inlined_call_operand.hbm [shape: f32[32,128], index: 9, kind: output, shape index: {}]
  %s10 = sld [smem:[#allocation0]]
  $region105: #{tpu_custom_call.1} parent=0
    _
  %s12 = ssub.s32 1, %s10
  %s13 = scalar_select 0, %s12, %s10
  $region1: #{tpu_custom_call.1} parent=0
    #allocation2 [shape = 'u8[8192]{0}', space=vmem, size = 0x2000, scoped, tag = 'input window, operand 0']
    #allocation3 [shape = 's32[2]{0}', space=sflag, size = 0x8, scoped, tag = 'scoped memory for tpu_custom_call.1']
    #allocation4 [shape = 's32[2]{0}', space=sflag, size = 0x8, scoped, tag = 'scoped memory for tpu_custom_call.1']
    #allocation5 [shape = 'u8[32768]{0}', space=vmem, size = 0x8000, scoped, tag = 'input window, operand 1, single buffered']
    #allocation6 [shape = 's32[1]{0}', space=sflag, size = 0x4, scoped, tag = 'scoped memory for tpu_custom_call.1']
    #allocation7 [shape = 'u8[512]{0}', space=vmem, size = 0x400, scoped, tag = 'input window, operand 2, single buffered']
    #allocation8 [shape = 'u8[32768]{0}', space=vmem, size = 0x8000, scoped, tag = 'input window, operand 3, single buffered']
    #allocation9 [shape = 's32[1]{0}', space=sflag, size = 0x4, scoped, tag = 'scoped memory for tpu_custom_call.1']
    #allocation10 [shape = 'u8[512]{0}', space=vmem, size = 0x400, scoped, tag = 'input window, operand 4, single buffered']
    #allocation11 [shape = 'u8[32768]{0}', space=vmem, size = 0x8000, scoped, tag = 'input window, operand 5, single buffered']
    #allocation12 [shape = 's32[1]{0}', space=sflag, size = 0x4, scoped, tag = 'scoped memory for tpu_custom_call.1']
    #allocation13 [shape = 'u8[512]{0}', space=vmem, size = 0x400, scoped, tag = 'input window, operand 6, single buffered']
    #allocation14 [shape = 'u8[32768]{0}', space=vmem, size = 0x8000, scoped, tag = 'input window, operand 7, single buffered']
    #allocation15 [shape = 's32[1]{0}', space=sflag, size = 0x4, scoped, tag = 'scoped memory for tpu_custom_call.1']
    #allocation16 [shape = 'u8[512]{0}', space=vmem, size = 0x400, scoped, tag = 'input window, operand 8, single buffered']
    #allocation17 [shape = 'u8[16384]{0}', space=vmem, size = 0x4000, scoped, tag = 'output window, operand 0']
    %14 = vsyncpa [#allocation3], 0
    %s15 = scalar_lea.sflag [#allocation3], 1
    %16 = vsyncpa %s15, 0
    %17 = vsyncpa [#allocation6], 0
    %18 = vsyncpa [#allocation9], 0
    %19 = vsyncpa [#allocation12], 0
    %20 = vsyncpa [#allocation15], 0
    %21 = vsyncpa [#allocation4], 0
    %s22 = scalar_lea.sflag [#allocation4], 1
    %23 = vsyncpa %s22, 0
    loop: start=0, step=1, limit=4
    $region2: #{tpu_custom_call.1} parent=1 // loop_pre_header
      _
    $region3: #{tpu_custom_call.1} parent=1 // loop_header
      %s25 = sphi 0, %s29
      %p26 = scmp.ge.s32.totalorder %s25, 4
      %s35 = sphi 0, %s37
      %s38 = sphi 0, %s35
      %s39 = sphi 0, %s38
      %s55 = sphi 0, %s39
      %s59 = sphi 0, %s59
      %s61 = sphi 0, %s59
      %s62 = sphi 0, %s61
      %s76 = sphi 0, %s62
      %s80 = sphi 0, %s80
      %s82 = sphi 0, %s80
      %s83 = sphi 0, %s82
      %s97 = sphi 0, %s83
      %s101 = sphi 0, %s101
      %s103 = sphi 0, %s101
      %s104 = sphi 0, %s103
      %s118 = sphi 0, %s104
      %s122 = sphi 0, %s122
      %s124 = sphi 0, %s122
      %s125 = sphi 0, %s124
      %s139 = sphi 0, %s125
      %s143 = sphi 0, %s143
      %s145 = sphi 0, %s143
      %s146 = sphi 0, %s145
      %s160 = sphi 0, %s146
      %s164 = sphi 0, %s164
      %s166 = sphi 0, %s164
      %s167 = sphi 0, %s166
      %s181 = sphi 0, %s167
      %s185 = sphi 0, %s185
      %s187 = sphi 0, %s185
      %s188 = sphi 0, %s187
      %s202 = sphi 0, %s188
      %s206 = sphi 0, %s206
      %s208 = sphi 0, %s206
      %s209 = sphi 0, %s208
      %s223 = sphi 0, %s209
      %s229 = sphi 0, %s231
      %s232 = sphi 0, %s229
      %s233 = sphi 0, %s232
      %s249 = sphi 0, %s233
    $region4: #{tpu_custom_call.1} parent=1 // loop_header_branch
      %28 = sbr.rel (%p26) target = $region8
    $region5: #{tpu_custom_call.1} parent=1 // loop_body
      %s30 = ssub.s32 %s25, 1
      %s31 = ssub.s32 %s25, 2
      %s32 = sadd.s32 %s25, 1
      %s33 = ssub.s32 %s25, %s32
      %p34 = scmp.eq.s32.totalorder %s33, 0
      %s36 = sadd.s32 %s35, 1
      %s37 = scalar_select %p34, %s35, %s36
      %p40 = pneg %p34
      %p41 = scmp.eq.s32.totalorder %s25, 1
      %p42 = por %p40, %p41
      %p43 = scmp.ne.s32.totalorder %s35, %s38
      %p44 = scmp.eq.s32.totalorder %s25, 0
      %p45 = por %p43, %p44
      %p46 = scmp.ne.s32.totalorder %s35, %s38
      %p47 = scmp.eq.s32.totalorder %s30, 1
      %p48 = por %p46, %p47
      %p49 = scmp.ne.s32.totalorder %s38, %s39
      %p50 = scmp.eq.s32.totalorder %s30, 0
      %p51 = por %p49, %p50
      %p52 = scmp.ne.s32.totalorder %s38, %s39
      %p53 = scmp.eq.s32.totalorder %s31, 1
      %p54 = por %p52, %p53
      %p56 = scmp.ne.s32.totalorder %s39, %s55
      %p57 = scmp.eq.s32.totalorder %s31, 0
      %p58 = por %p56, %p57
      %s60 = sadd.s32 %s59, 1
      %p63 = scmp.eq.s32.totalorder %s25, 1
      %p64 = scmp.ne.s32.totalorder %s59, %s61
      %p65 = scmp.eq.s32.totalorder %s25, 0
      %p66 = por %p64, %p65
      %p67 = scmp.ne.s32.totalorder %s59, %s61
      %p68 = scmp.eq.s32.totalorder %s30, 1
      %p69 = por %p67, %p68
      %p70 = scmp.ne.s32.totalorder %s61, %s62
      %p71 = scmp.eq.s32.totalorder %s30, 0
      %p72 = por %p70, %p71
      %p73 = scmp.ne.s32.totalorder %s61, %s62
      %p74 = scmp.eq.s32.totalorder %s31, 1
      %p75 = por %p73, %p74
      %p77 = scmp.ne.s32.totalorder %s62, %s76
      %p78 = scmp.eq.s32.totalorder %s31, 0
      %p79 = por %p77, %p78
      %s81 = sadd.s32 %s80, 1
      %p84 = scmp.eq.s32.totalorder %s25, 1
      %p85 = scmp.ne.s32.totalorder %s80, %s82
      %p86 = scmp.eq.s32.totalorder %s25, 0
      %p87 = por %p85, %p86
      %p88 = scmp.ne.s32.totalorder %s80, %s82
      %p89 = scmp.eq.s32.totalorder %s30, 1
      %p90 = por %p88, %p89
      %p91 = scmp.ne.s32.totalorder %s82, %s83
      %p92 = scmp.eq.s32.totalorder %s30, 0
      %p93 = por %p91, %p92
      %p94 = scmp.ne.s32.totalorder %s82, %s83
      %p95 = scmp.eq.s32.totalorder %s31, 1
      %p96 = por %p94, %p95
      %p98 = scmp.ne.s32.totalorder %s83, %s97
      %p99 = scmp.eq.s32.totalorder %s31, 0
      %p100 = por %p98, %p99
      %s102 = sadd.s32 %s101, 1
      %p105 = scmp.eq.s32.totalorder %s25, 1
      %p106 = scmp.ne.s32.totalorder %s101, %s103
      %p107 = scmp.eq.s32.totalorder %s25, 0
      %p108 = por %p106, %p107
      %p109 = scmp.ne.s32.totalorder %s101, %s103
      %p110 = scmp.eq.s32.totalorder %s30, 1
      %p111 = por %p109, %p110
      %p112 = scmp.ne.s32.totalorder %s103, %s104
      %p113 = scmp.eq.s32.totalorder %s30, 0
      %p114 = por %p112, %p113
      %p115 = scmp.ne.s32.totalorder %s103, %s104
      %p116 = scmp.eq.s32.totalorder %s31, 1
      %p117 = por %p115, %p116
      %p119 = scmp.ne.s32.totalorder %s104, %s118
      %p120 = scmp.eq.s32.totalorder %s31, 0
      %p121 = por %p119, %p120
      %s123 = sadd.s32 %s122, 1
      %p126 = scmp.eq.s32.totalorder %s25, 1
      %p127 = scmp.ne.s32.totalorder %s122, %s124
      %p128 = scmp.eq.s32.totalorder %s25, 0
      %p129 = por %p127, %p128
      %p130 = scmp.ne.s32.totalorder %s122, %s124
      %p131 = scmp.eq.s32.totalorder %s30, 1
      %p132 = por %p130, %p131
      %p133 = scmp.ne.s32.totalorder %s124, %s125
      %p134 = scmp.eq.s32.totalorder %s30, 0
      %p135 = por %p133, %p134
      %p136 = scmp.ne.s32.totalorder %s124, %s125
      %p137 = scmp.eq.s32.totalorder %s31, 1
      %p138 = por %p136, %p137
      %p140 = scmp.ne.s32.totalorder %s125, %s139
      %p141 = scmp.eq.s32.totalorder %s31, 0
      %p142 = por %p140, %p141
      %s144 = sadd.s32 %s143, 1
      %p147 = scmp.eq.s32.totalorder %s25, 1
      %p148 = scmp.ne.s32.totalorder %s143, %s145
      %p149 = scmp.eq.s32.totalorder %s25, 0
      %p150 = por %p148, %p149
      %p151 = scmp.ne.s32.totalorder %s143, %s145
      %p152 = scmp.eq.s32.totalorder %s30, 1
      %p153 = por %p151, %p152
      %p154 = scmp.ne.s32.totalorder %s145, %s146
      %p155 = scmp.eq.s32.totalorder %s30, 0
      %p156 = por %p154, %p155
      %p157 = scmp.ne.s32.totalorder %s145, %s146
      %p158 = scmp.eq.s32.totalorder %s31, 1
      %p159 = por %p157, %p158
      %p161 = scmp.ne.s32.totalorder %s146, %s160
      %p162 = scmp.eq.s32.totalorder %s31, 0
      %p163 = por %p161, %p162
      %s165 = sadd.s32 %s164, 1
      %p168 = scmp.eq.s32.totalorder %s25, 1
      %p169 = scmp.ne.s32.totalorder %s164, %s166
      %p170 = scmp.eq.s32.totalorder %s25, 0
      %p171 = por %p169, %p170
      %p172 = scmp.ne.s32.totalorder %s164, %s166
      %p173 = scmp.eq.s32.totalorder %s30, 1
      %p174 = por %p172, %p173
      %p175 = scmp.ne.s32.totalorder %s166, %s167
      %p176 = scmp.eq.s32.totalorder %s30, 0
      %p177 = por %p175, %p176
      %p178 = scmp.ne.s32.totalorder %s166, %s167
      %p179 = scmp.eq.s32.totalorder %s31, 1
      %p180 = por %p178, %p179
      %p182 = scmp.ne.s32.totalorder %s167, %s181
      %p183 = scmp.eq.s32.totalorder %s31, 0
      %p184 = por %p182, %p183
      %s186 = sadd.s32 %s185, 1
      %p189 = scmp.eq.s32.totalorder %s25, 1
      %p190 = scmp.ne.s32.totalorder %s185, %s187
      %p191 = scmp.eq.s32.totalorder %s25, 0
      %p192 = por %p190, %p191
      %p193 = scmp.ne.s32.totalorder %s185, %s187
      %p194 = scmp.eq.s32.totalorder %s30, 1
      %p195 = por %p193, %p194
      %p196 = scmp.ne.s32.totalorder %s187, %s188
      %p197 = scmp.eq.s32.totalorder %s30, 0
      %p198 = por %p196, %p197
      %p199 = scmp.ne.s32.totalorder %s187, %s188
      %p200 = scmp.eq.s32.totalorder %s31, 1
      %p201 = por %p199, %p200
      %p203 = scmp.ne.s32.totalorder %s188, %s202
      %p204 = scmp.eq.s32.totalorder %s31, 0
      %p205 = por %p203, %p204
      %s207 = sadd.s32 %s206, 1
      %p210 = scmp.eq.s32.totalorder %s25, 1
      %p211 = scmp.ne.s32.totalorder %s206, %s208
      %p212 = scmp.eq.s32.totalorder %s25, 0
      %p213 = por %p211, %p212
      %p214 = scmp.ne.s32.totalorder %s206, %s208
      %p215 = scmp.eq.s32.totalorder %s30, 1
      %p216 = por %p214, %p215
      %p217 = scmp.ne.s32.totalorder %s208, %s209
      %p218 = scmp.eq.s32.totalorder %s30, 0
      %p219 = por %p217, %p218
      %p220 = scmp.ne.s32.totalorder %s208, %s209
      %p221 = scmp.eq.s32.totalorder %s31, 1
      %p222 = por %p220, %p221
      %p224 = scmp.ne.s32.totalorder %s209, %s223
      %p225 = scmp.eq.s32.totalorder %s31, 0
      %p226 = por %p224, %p225
      %s227 = ssub.s32 %s25, %s32
      %p228 = scmp.eq.s32.totalorder %s227, 0
      %s230 = sadd.s32 %s229, 1
      %s231 = scalar_select %p228, %s229, %s230
      %p234 = pneg %p228
      %p235 = scmp.eq.s32.totalorder %s25, 1
      %p236 = por %p234, %p235
      %p237 = scmp.ne.s32.totalorder %s229, %s232
      %p238 = scmp.eq.s32.totalorder %s25, 0
      %p239 = por %p237, %p238
      %p240 = scmp.ne.s32.totalorder %s229, %s232
      %p241 = scmp.eq.s32.totalorder %s30, 1
      %p242 = por %p240, %p241
      %p243 = scmp.ne.s32.totalorder %s232, %s233
      %p244 = scmp.eq.s32.totalorder %s30, 0
      %p245 = por %p243, %p244
      %p246 = scmp.ne.s32.totalorder %s232, %s233
      %p247 = scmp.eq.s32.totalorder %s31, 1
      %p248 = por %p246, %p247
      %p250 = scmp.ne.s32.totalorder %s233, %s249
      %p251 = scmp.eq.s32.totalorder %s31, 0
      %p252 = por %p250, %p251
      %p253 = scmp.le.s32.totalorder 1, %s25
      %p254 = scmp.lt.s32.totalorder %s25, 3
      %p255 = pnand %p253, %p254
      %p256 = pneg %p255
      // Predicated region
      $region9: #{tpu_custom_call.1} parent=5 // pred_check
        _
      $region10: #{tpu_custom_call.1} parent=5 // pred_check_branch
        %258 = sbr.rel (%p255) target = $region12
      $region11: #{tpu_custom_call.1} parent=5 // pred_region
        %s259 = ssub.s32 %s25, 1
        // Predicated region
        $region13: #{tpu_custom_call.1} parent=11 // pred_check
          %p260 = pneg %p72
        $region14: #{tpu_custom_call.1} parent=11 // pred_check_branch
          %262 = sbr.rel (%p260) target = $region16
        $region15: #{tpu_custom_call.1} parent=11 // pred_region
          %s264 = ssub.s32 1024, 1024
          %265 = vsyncadd [#allocation6], %s264
          %s266 = sshll.u32 [#allocation5], 4
          %s267 = int_to_ptr.vmem [resolvable:$true] %s266
          %272 = dma.hbm_to_vmem [thread:$0]  %s1, 1024, %s267, [#allocation6], 64, 64, 4
        $region16: #{tpu_custom_call.1} parent=11 // pred_fallthru
          _
        // Predicated region
        $region17: #{tpu_custom_call.1} parent=11 // pred_check
          %p273 = pneg %p93
        $region18: #{tpu_custom_call.1} parent=11 // pred_check_branch
          %275 = sbr.rel (%p273) target = $region20
        $region19: #{tpu_custom_call.1} parent=11 // pred_region
          %s277 = ssub.s32 16, 16
          %278 = vsyncadd [#allocation6], %s277
          %s280 = sshll.u32 [#allocation7], 4
          %s281 = int_to_ptr.vmem [resolvable:$true] %s280
          %283 = dma.hbm_to_vmem [thread:$0]  %s2, 16, %s281, [#allocation6]
        $region20: #{tpu_custom_call.1} parent=11 // pred_fallthru
          _
        // Predicated region
        $region21: #{tpu_custom_call.1} parent=11 // pred_check
          %p284 = pneg %p114
        $region22: #{tpu_custom_call.1} parent=11 // pred_check_branch
          %286 = sbr.rel (%p284) target = $region24
        $region23: #{tpu_custom_call.1} parent=11 // pred_region
          %s288 = ssub.s32 1024, 1024
          %289 = vsyncadd [#allocation9], %s288
          %s290 = sshll.u32 [#allocation8], 4
          %s291 = int_to_ptr.vmem [resolvable:$true] %s290
          %296 = dma.hbm_to_vmem [thread:$0]  %s3, 1024, %s291, [#allocation9], 64, 64, 4
        $region24: #{tpu_custom_call.1} parent=11 // pred_fallthru
          _
        // Predicated region
        $region25: #{tpu_custom_call.1} parent=11 // pred_check
          %p297 = pneg %p135
        $region26: #{tpu_custom_call.1} parent=11 // pred_check_branch
          %299 = sbr.rel (%p297) target = $region28
        $region27: #{tpu_custom_call.1} parent=11 // pred_region
          %s301 = ssub.s32 16, 16
          %302 = vsyncadd [#allocation9], %s301
          %s304 = sshll.u32 [#allocation10], 4
          %s305 = int_to_ptr.vmem [resolvable:$true] %s304
          %307 = dma.hbm_to_vmem [thread:$0]  %s4, 16, %s305, [#allocation9]
        $region28: #{tpu_custom_call.1} parent=11 // pred_fallthru
          _
        // Predicated region
        $region29: #{tpu_custom_call.1} parent=11 // pred_check
          %p308 = pneg %p156
        $region30: #{tpu_custom_call.1} parent=11 // pred_check_branch
          %310 = sbr.rel (%p308) target = $region32
        $region31: #{tpu_custom_call.1} parent=11 // pred_region
          %s312 = ssub.s32 1024, 1024
          %313 = vsyncadd [#allocation12], %s312
          %s314 = sshll.u32 [#allocation11], 4
          %s315 = int_to_ptr.vmem [resolvable:$true] %s314
          %320 = dma.hbm_to_vmem [thread:$0]  %s5, 1024, %s315, [#allocation12], 64, 64, 4
        $region32: #{tpu_custom_call.1} parent=11 // pred_fallthru
          _
        // Predicated region
        $region33: #{tpu_custom_call.1} parent=11 // pred_check
          %p321 = pneg %p177
        $region34: #{tpu_custom_call.1} parent=11 // pred_check_branch
          %323 = sbr.rel (%p321) target = $region36
        $region35: #{tpu_custom_call.1} parent=11 // pred_region
          %s325 = ssub.s32 16, 16
          %326 = vsyncadd [#allocation12], %s325
          %s328 = sshll.u32 [#allocation13], 4
          %s329 = int_to_ptr.vmem [resolvable:$true] %s328
          %331 = dma.hbm_to_vmem [thread:$0]  %s6, 16, %s329, [#allocation12]
        $region36: #{tpu_custom_call.1} parent=11 // pred_fallthru
          _
        // Predicated region
        $region37: #{tpu_custom_call.1} parent=11 // pred_check
          %p332 = pneg %p198
        $region38: #{tpu_custom_call.1} parent=11 // pred_check_branch
          %334 = sbr.rel (%p332) target = $region40
        $region39: #{tpu_custom_call.1} parent=11 // pred_region
          %s336 = ssub.s32 1024, 1024
          %337 = vsyncadd [#allocation15], %s336
          %s338 = sshll.u32 [#allocation14], 4
          %s339 = int_to_ptr.vmem [resolvable:$true] %s338
          %344 = dma.hbm_to_vmem [thread:$0]  %s7, 1024, %s339, [#allocation15], 64, 64, 4
        $region40: #{tpu_custom_call.1} parent=11 // pred_fallthru
          _
        // Predicated region
        $region41: #{tpu_custom_call.1} parent=11 // pred_check
          %p345 = pneg %p219
        $region42: #{tpu_custom_call.1} parent=11 // pred_check_branch
          %347 = sbr.rel (%p345) target = $region44
        $region43: #{tpu_custom_call.1} parent=11 // pred_region
          %s349 = ssub.s32 16, 16
          %350 = vsyncadd [#allocation15], %s349
          %s352 = sshll.u32 [#allocation16], 4
          %s353 = int_to_ptr.vmem [resolvable:$true] %s352
          %355 = dma.hbm_to_vmem [thread:$0]  %s8, 16, %s353, [#allocation15]
        $region44: #{tpu_custom_call.1} parent=11 // pred_fallthru
          _
      $region12: #{tpu_custom_call.1} parent=5 // pred_fallthru
        _
      %p356 = scmp.lt.s32.totalorder %s25, 2
      // Predicated region
      $region45: #{tpu_custom_call.1} parent=5 // pred_check
        %p357 = pneg %p356
      $region46: #{tpu_custom_call.1} parent=5 // pred_check_branch
        %359 = sbr.rel (%p357) target = $region48
      $region47: #{tpu_custom_call.1} parent=5 // pred_region
        // Predicated region
        $region49: #{tpu_custom_call.1} parent=47 // pred_check
          %p360 = pneg %p45
        $region50: #{tpu_custom_call.1} parent=47 // pred_check_branch
          %362 = sbr.rel (%p360) target = $region52
        $region51: #{tpu_custom_call.1} parent=47 // pred_region
          %s363 = sand.u32 %s35, 1
          %s364 = scalar_lea.sflag [#allocation3], %s363
          %s365 = sand.u32 %s35, 1
          %s366 = smul.addr %s365, 8
          %s367 = scalar_lea.vmem [#allocation2], %s366
          %s368 = smul.u32 2, %s25
          %s370 = ssub.s32 128, 128
          %371 = vsyncadd %s364, %s370
          %s372 = smul.addr %s368, 64
          %s373 = scalar_lea.hbm %s0, %s372
          %s374 = sshll.u32 %s367, 4
          %s375 = int_to_ptr.vmem [resolvable:$true] %s374
          %380 = dma.hbm_to_vmem [thread:$0]  %s373, 128, %s375, %s364, 64, 64, 4
        $region52: #{tpu_custom_call.1} parent=47 // pred_fallthru
          _
      $region48: #{tpu_custom_call.1} parent=5 // pred_fallthru
        _
      %p381 = scmp.le.s32.totalorder 1, %s25
      %p382 = scmp.lt.s32.totalorder %s25, 3
      %p383 = pnand %p381, %p382
      %p384 = pneg %p383
      // Predicated region
      $region53: #{tpu_custom_call.1} parent=5 // pred_check
        _
      $region54: #{tpu_custom_call.1} parent=5 // pred_check_branch
        %386 = sbr.rel (%p383) target = $region56
      $region55: #{tpu_custom_call.1} parent=5 // pred_region
        %s387 = ssub.s32 %s25, 1
        %s388 = sand.u32 %s38, 1
        %s389 = scalar_lea.sflag [#allocation3], %s388
        %s390 = sand.u32 %s38, 1
        %s391 = smul.addr %s390, 8
        %s392 = scalar_lea.vmem [#allocation2], %s391
        // Predicated region
        $region57: #{tpu_custom_call.1} parent=55 // pred_check
          %p393 = pneg %p51
        $region58: #{tpu_custom_call.1} parent=55 // pred_check_branch
          %395 = sbr.rel (%p393) target = $region60
        $region59: #{tpu_custom_call.1} parent=55 // pred_region
          %396 = dma.done %s389, 128
        $region60: #{tpu_custom_call.1} parent=55 // pred_fallthru
          _
        // Predicated region
        $region61: #{tpu_custom_call.1} parent=55 // pred_check
          %p397 = pneg %p72
        $region62: #{tpu_custom_call.1} parent=55 // pred_check_branch
          %399 = sbr.rel (%p397) target = $region64
        $region63: #{tpu_custom_call.1} parent=55 // pred_region
          %400 = dma.done [#allocation6], 1024
        $region64: #{tpu_custom_call.1} parent=55 // pred_fallthru
          _
        // Predicated region
        $region65: #{tpu_custom_call.1} parent=55 // pred_check
          %p401 = pneg %p93
        $region66: #{tpu_custom_call.1} parent=55 // pred_check_branch
          %403 = sbr.rel (%p401) target = $region68
        $region67: #{tpu_custom_call.1} parent=55 // pred_region
          %404 = dma.done [#allocation6], 16
        $region68: #{tpu_custom_call.1} parent=55 // pred_fallthru
          _
        // Predicated region
        $region69: #{tpu_custom_call.1} parent=55 // pred_check
          %p405 = pneg %p114
        $region70: #{tpu_custom_call.1} parent=55 // pred_check_branch
          %407 = sbr.rel (%p405) target = $region72
        $region71: #{tpu_custom_call.1} parent=55 // pred_region
          %408 = dma.done [#allocation9], 1024
        $region72: #{tpu_custom_call.1} parent=55 // pred_fallthru
          _
        // Predicated region
        $region73: #{tpu_custom_call.1} parent=55 // pred_check
          %p409 = pneg %p135
        $region74: #{tpu_custom_call.1} parent=55 // pred_check_branch
          %411 = sbr.rel (%p409) target = $region76
        $region75: #{tpu_custom_call.1} parent=55 // pred_region
          %412 = dma.done [#allocation9], 16
        $region76: #{tpu_custom_call.1} parent=55 // pred_fallthru
          _
        // Predicated region
        $region77: #{tpu_custom_call.1} parent=55 // pred_check
          %p413 = pneg %p156
        $region78: #{tpu_custom_call.1} parent=55 // pred_check_branch
          %415 = sbr.rel (%p413) target = $region80
        $region79: #{tpu_custom_call.1} parent=55 // pred_region
          %416 = dma.done [#allocation12], 1024
        $region80: #{tpu_custom_call.1} parent=55 // pred_fallthru
          _
        // Predicated region
        $region81: #{tpu_custom_call.1} parent=55 // pred_check
          %p417 = pneg %p177
        $region82: #{tpu_custom_call.1} parent=55 // pred_check_branch
          %419 = sbr.rel (%p417) target = $region84
        $region83: #{tpu_custom_call.1} parent=55 // pred_region
          %420 = dma.done [#allocation12], 16
        $region84: #{tpu_custom_call.1} parent=55 // pred_fallthru
          _
        // Predicated region
        $region85: #{tpu_custom_call.1} parent=55 // pred_check
          %p421 = pneg %p198
        $region86: #{tpu_custom_call.1} parent=55 // pred_check_branch
          %423 = sbr.rel (%p421) target = $region88
        $region87: #{tpu_custom_call.1} parent=55 // pred_region
          %424 = dma.done [#allocation15], 1024
        $region88: #{tpu_custom_call.1} parent=55 // pred_fallthru
          _
        // Predicated region
        $region89: #{tpu_custom_call.1} parent=55 // pred_check
          %p425 = pneg %p219
        $region90: #{tpu_custom_call.1} parent=55 // pred_check_branch
          %427 = sbr.rel (%p425) target = $region92
        $region91: #{tpu_custom_call.1} parent=55 // pred_region
          %428 = dma.done [#allocation15], 16
        $region92: #{tpu_custom_call.1} parent=55 // pred_fallthru
          _
        %s429 = sand.u32 %s38, 1
        %s430 = scalar_lea.sflag [#allocation3], %s429
        %s431 = sand.u32 %s38, 1
        %s432 = smul.addr %s431, 8
        %s433 = scalar_lea.vmem [#allocation2], %s432
        %p434 = pneg %p51
        %p435 = pneg %p48
        %p436 = pneg %p72
        %p437 = pneg %p69
        %p438 = pneg %p93
        %p439 = pneg %p90
        %p440 = pneg %p114
        %p441 = pneg %p111
        %p442 = pneg %p135
        %p443 = pneg %p132
        %p444 = pneg %p156
        %p445 = pneg %p153
        %p446 = pneg %p177
        %p447 = pneg %p174
        %p448 = pneg %p198
        %p449 = pneg %p195
        %p450 = pneg %p219
        %p451 = pneg %p216
        %p452 = pneg %p245
        %p453 = pneg %p242
        %s454 = sand.u32 %s232, 1
        %s455 = scalar_lea.sflag [#allocation4], %s454
        %s456 = sand.u32 %s232, 1
        %s457 = smul.addr %s456, 16
        %s458 = scalar_lea.vmem [#allocation17], %s457
        %s459 = smul.u32 2, %s30
        %s460 = smul.u32 2, %s30
        %v462 = vld [vmem:[%s392] sm:$0xf]
        %v463 = vld [vmem:[%s392 + $0x4] sm:$0xf]
        %v464 = vld [vmem:[#allocation5] sm:$0xf]
        %v465 = vld [vmem:[#allocation5 + $0x4] sm:$0xf]
        %v466 = vld [vmem:[#allocation5 + $0x8] sm:$0xf]
        %v467 = vld [vmem:[#allocation5 + $0xc] sm:$0xf]
        %v468 = vld [vmem:[#allocation5 + $0x10] sm:$0xf]
        %v469 = vld [vmem:[#allocation5 + $0x14] sm:$0xf]
        %v470 = vld [vmem:[#allocation5 + $0x18] sm:$0xf]
        %v471 = vld [vmem:[#allocation5 + $0x1c] sm:$0xf]
        %v472 = vld [vmem:[#allocation5 + $0x20] sm:$0xf]
        %v473 = vld [vmem:[#allocation5 + $0x24] sm:$0xf]
        %v474 = vld [vmem:[#allocation5 + $0x28] sm:$0xf]
        %v475 = vld [vmem:[#allocation5 + $0x2c] sm:$0xf]
        %v476 = vld [vmem:[#allocation5 + $0x30] sm:$0xf]
        %v477 = vld [vmem:[#allocation5 + $0x34] sm:$0xf]
        %v478 = vld [vmem:[#allocation5 + $0x38] sm:$0xf]
        %v479 = vld [vmem:[#allocation5 + $0x3c] sm:$0xf]
        %v480 = vld [vmem:[#allocation7] sm:$0x1]
        %v482 = vlaneseq
        %v483 = vshrl.u32 %v482, 7
        %v484 = vsub.s32 0, %v483
        %v485 = vrot.slane %v480, %v484
        %v489 = vunpack.c.l.b16 %v462
        %v490 = vunpack.c.l.b16 %v463
        %v491 = vpack.c.b16 %v490, %v489
        %v509 = vunpack.c.l.b16 %v464
        %v510 = vunpack.c.l.b16 %v465
        %v511 = vunpack.c.l.b16 %v466
        %v512 = vunpack.c.l.b16 %v467
        %v513 = vunpack.c.l.b16 %v468
        %v514 = vunpack.c.l.b16 %v469
        %v515 = vunpack.c.l.b16 %v470
        %v516 = vunpack.c.l.b16 %v471
        %v517 = vunpack.c.l.b16 %v472
        %v518 = vunpack.c.l.b16 %v473
        %v519 = vunpack.c.l.b16 %v474
        %v520 = vunpack.c.l.b16 %v475
        %v521 = vunpack.c.l.b16 %v476
        %v522 = vunpack.c.l.b16 %v477
        %v523 = vunpack.c.l.b16 %v478
        %v524 = vunpack.c.l.b16 %v479
        %v525 = vpack.c.b16 %v510, %v509
        %v526 = vpack.c.b16 %v512, %v511
        %v527 = vpack.c.b16 %v514, %v513
        %v528 = vpack.c.b16 %v516, %v515
        %v529 = vpack.c.b16 %v518, %v517
        %v530 = vpack.c.b16 %v520, %v519
        %v531 = vpack.c.b16 %v522, %v521
        %v532 = vpack.c.b16 %v524, %v523
        %541 = vmatprep.subr.bf16.mxu0 0
        %542 = vmatpush1.bf16.msra.mxu0 %v525
        %543 = vmatprep.subr.bf16.mxu0 0
        %544 = vmatpush1.bf16.msra.mxu0 %v526
        %545 = vmatprep.subr.bf16.mxu0 0
        %546 = vmatpush1.bf16.msra.mxu0 %v527
        %547 = vmatprep.subr.bf16.mxu0 0
        %548 = vmatpush1.bf16.msra.mxu0 %v528
        %549 = vmatprep.subr.bf16.mxu0 0
        %550 = vmatpush1.bf16.msra.mxu0 %v529
        %551 = vmatprep.subr.bf16.mxu0 0
        %552 = vmatpush1.bf16.msra.mxu0 %v530
        %553 = vmatprep.subr.bf16.mxu0 0
        %554 = vmatpush1.bf16.msra.mxu0 %v531
        %555 = vmatprep.subr.bf16.mxu0 0
        %556 = vmatpush1.bf16.msra.mxu0 %v532
        %557 = vmatprep.subr.bf16.mxu0 0
        %558 = vmatpush1.bf16.msra.mxu0 0
        %559 = vmatprep.subr.bf16.mxu0 0
        %560 = vmatpush1.bf16.msra.mxu0 0
        %561 = vmatprep.subr.bf16.mxu0 0
        %562 = vmatpush1.bf16.msra.mxu0 0
        %563 = vmatprep.subr.bf16.mxu0 0
        %564 = vmatpush1.bf16.msra.mxu0 0
        %565 = vmatprep.subr.bf16.mxu0 0
        %566 = vmatpush1.bf16.msra.mxu0 0
        %567 = vmatprep.subr.bf16.mxu0 0
        %568 = vmatpush1.bf16.msra.mxu0 0
        %569 = vmatprep.subr.bf16.mxu0 0
        %570 = vmatpush1.bf16.msra.mxu0 0
        %571 = vmatprep.subr.bf16.mxu0 0
        %572 = vmatpush1.bf16.msra.mxu0 0
        %573 = vmatprep.mubr.bf16.mxu0 0
        %574 = vmatmul.mubr.bf16.gmra.mrb[0].mxu0 %v491
        %v575 = vpop.f32.mrb[0].mxu0
        %v576 = vadd.f32 %v485, %v575
        %v577 = vpop.f32.mrb[0].mxu0
        %v578 = vpop.f32.mrb[0].mxu0
        %v579 = vadd.f32 %v485, %v578
        %v580 = vpop.f32.mrb[0].mxu0
        %581 = vdwg.mxu0
        %vm582 = vcmp.ge.f32.partialorder %v576, 0.0
        %vm583 = vcmp.ge.f32.partialorder %v579, 0.0
        %v584 = vmul.f32 %v576, 0.2
        %v585 = vmul.f32 %v579, 0.2
        %v586 = vsel %vm582, %v576, %v584
        %v587 = vsel %vm583, %v579, %v585
        %v588 = vpack.c.bf16 %v587, %v586
        %v589 = vld [vmem:[#allocation8] sm:$0xf]
        %v590 = vld [vmem:[#allocation8 + $0x4] sm:$0xf]
        %v591 = vld [vmem:[#allocation8 + $0x8] sm:$0xf]
        %v592 = vld [vmem:[#allocation8 + $0xc] sm:$0xf]
        %v593 = vld [vmem:[#allocation8 + $0x10] sm:$0xf]
        %v594 = vld [vmem:[#allocation8 + $0x14] sm:$0xf]
        %v595 = vld [vmem:[#allocation8 + $0x18] sm:$0xf]
        %v596 = vld [vmem:[#allocation8 + $0x1c] sm:$0xf]
        %v597 = vld [vmem:[#allocation8 + $0x20] sm:$0xf]
        %v598 = vld [vmem:[#allocation8 + $0x24] sm:$0xf]
        %v599 = vld [vmem:[#allocation8 + $0x28] sm:$0xf]
        %v600 = vld [vmem:[#allocation8 + $0x2c] sm:$0xf]
        %v601 = vld [vmem:[#allocation8 + $0x30] sm:$0xf]
        %v602 = vld [vmem:[#allocation8 + $0x34] sm:$0xf]
        %v603 = vld [vmem:[#allocation8 + $0x38] sm:$0xf]
        %v604 = vld [vmem:[#allocation8 + $0x3c] sm:$0xf]
        %v605 = vld [vmem:[#allocation10] sm:$0x1]
        %v607 = vlaneseq
        %v608 = vshrl.u32 %v607, 7
        %v609 = vsub.s32 0, %v608
        %v610 = vrot.slane %v605, %v609
        %v628 = vunpack.c.l.b16 %v589
        %v629 = vunpack.c.l.b16 %v590
        %v630 = vunpack.c.l.b16 %v591
        %v631 = vunpack.c.l.b16 %v592
        %v632 = vunpack.c.l.b16 %v593
        %v633 = vunpack.c.l.b16 %v594
        %v634 = vunpack.c.l.b16 %v595
        %v635 = vunpack.c.l.b16 %v596
        %v636 = vunpack.c.l.b16 %v597
        %v637 = vunpack.c.l.b16 %v598
        %v638 = vunpack.c.l.b16 %v599
        %v639 = vunpack.c.l.b16 %v600
        %v640 = vunpack.c.l.b16 %v601
        %v641 = vunpack.c.l.b16 %v602
        %v642 = vunpack.c.l.b16 %v603
        %v643 = vunpack.c.l.b16 %v604
        %v644 = vpack.c.b16 %v629, %v628
        %v645 = vpack.c.b16 %v631, %v630
        %v646 = vpack.c.b16 %v633, %v632
        %v647 = vpack.c.b16 %v635, %v634
        %v648 = vpack.c.b16 %v637, %v636
        %v649 = vpack.c.b16 %v639, %v638
        %v650 = vpack.c.b16 %v641, %v640
        %v651 = vpack.c.b16 %v643, %v642
        %660 = vmatprep.subr.bf16.mxu0 0
        %661 = vmatpush1.bf16.msra.mxu0 %v644
        %662 = vmatprep.subr.bf16.mxu0 0
        %663 = vmatpush1.bf16.msra.mxu0 %v645
        %664 = vmatprep.subr.bf16.mxu0 0
        %665 = vmatpush1.bf16.msra.mxu0 %v646
        %666 = vmatprep.subr.bf16.mxu0 0
        %667 = vmatpush1.bf16.msra.mxu0 %v647
        %668 = vmatprep.subr.bf16.mxu0 0
        %669 = vmatpush1.bf16.msra.mxu0 %v648
        %670 = vmatprep.subr.bf16.mxu0 0
        %671 = vmatpush1.bf16.msra.mxu0 %v649
        %672 = vmatprep.subr.bf16.mxu0 0
        %673 = vmatpush1.bf16.msra.mxu0 %v650
        %674 = vmatprep.subr.bf16.mxu0 0
        %675 = vmatpush1.bf16.msra.mxu0 %v651
        %676 = vmatprep.subr.bf16.mxu0 0
        %677 = vmatpush1.bf16.msra.mxu0 0
        %678 = vmatprep.subr.bf16.mxu0 0
        %679 = vmatpush1.bf16.msra.mxu0 0
        %680 = vmatprep.subr.bf16.mxu0 0
        %681 = vmatpush1.bf16.msra.mxu0 0
        %682 = vmatprep.subr.bf16.mxu0 0
        %683 = vmatpush1.bf16.msra.mxu0 0
        %684 = vmatprep.subr.bf16.mxu0 0
        %685 = vmatpush1.bf16.msra.mxu0 0
        %686 = vmatprep.subr.bf16.mxu0 0
        %687 = vmatpush1.bf16.msra.mxu0 0
        %688 = vmatprep.subr.bf16.mxu0 0
        %689 = vmatpush1.bf16.msra.mxu0 0
        %690 = vmatprep.subr.bf16.mxu0 0
        %691 = vmatpush1.bf16.msra.mxu0 0
        %692 = vmatprep.mubr.bf16.mxu0 0
        %693 = vmatmul.mubr.bf16.gmra.mrb[0].mxu0 %v588
        %v694 = vpop.f32.mrb[0].mxu0
        %v695 = vadd.f32 %v610, %v694
        %v696 = vpop.f32.mrb[0].mxu0
        %v697 = vpop.f32.mrb[0].mxu0
        %v698 = vadd.f32 %v610, %v697
        %v699 = vpop.f32.mrb[0].mxu0
        %700 = vdwg.mxu0
        %vm701 = vcmp.ge.f32.partialorder %v695, 0.0
        %vm702 = vcmp.ge.f32.partialorder %v698, 0.0
        %v703 = vmul.f32 %v695, 0.2
        %v704 = vmul.f32 %v698, 0.2
        %v705 = vsel %vm701, %v695, %v703
        %v706 = vsel %vm702, %v698, %v704
        %v707 = vpack.c.bf16 %v706, %v705
        %v708 = vld [vmem:[#allocation11] sm:$0xf]
        %v709 = vld [vmem:[#allocation11 + $0x4] sm:$0xf]
        %v710 = vld [vmem:[#allocation11 + $0x8] sm:$0xf]
        %v711 = vld [vmem:[#allocation11 + $0xc] sm:$0xf]
        %v712 = vld [vmem:[#allocation11 + $0x10] sm:$0xf]
        %v713 = vld [vmem:[#allocation11 + $0x14] sm:$0xf]
        %v714 = vld [vmem:[#allocation11 + $0x18] sm:$0xf]
        %v715 = vld [vmem:[#allocation11 + $0x1c] sm:$0xf]
        %v716 = vld [vmem:[#allocation11 + $0x20] sm:$0xf]
        %v717 = vld [vmem:[#allocation11 + $0x24] sm:$0xf]
        %v718 = vld [vmem:[#allocation11 + $0x28] sm:$0xf]
        %v719 = vld [vmem:[#allocation11 + $0x2c] sm:$0xf]
        %v720 = vld [vmem:[#allocation11 + $0x30] sm:$0xf]
        %v721 = vld [vmem:[#allocation11 + $0x34] sm:$0xf]
        %v722 = vld [vmem:[#allocation11 + $0x38] sm:$0xf]
        %v723 = vld [vmem:[#allocation11 + $0x3c] sm:$0xf]
        %v724 = vld [vmem:[#allocation13] sm:$0x1]
        %v726 = vlaneseq
        %v727 = vshrl.u32 %v726, 7
        %v728 = vsub.s32 0, %v727
        %v729 = vrot.slane %v724, %v728
        %v747 = vunpack.c.l.b16 %v708
        %v748 = vunpack.c.l.b16 %v709
        %v749 = vunpack.c.l.b16 %v710
        %v750 = vunpack.c.l.b16 %v711
        %v751 = vunpack.c.l.b16 %v712
        %v752 = vunpack.c.l.b16 %v713
        %v753 = vunpack.c.l.b16 %v714
        %v754 = vunpack.c.l.b16 %v715
        %v755 = vunpack.c.l.b16 %v716
        %v756 = vunpack.c.l.b16 %v717
        %v757 = vunpack.c.l.b16 %v718
        %v758 = vunpack.c.l.b16 %v719
        %v759 = vunpack.c.l.b16 %v720
        %v760 = vunpack.c.l.b16 %v721
        %v761 = vunpack.c.l.b16 %v722
        %v762 = vunpack.c.l.b16 %v723
        %v763 = vpack.c.b16 %v748, %v747
        %v764 = vpack.c.b16 %v750, %v749
        %v765 = vpack.c.b16 %v752, %v751
        %v766 = vpack.c.b16 %v754, %v753
        %v767 = vpack.c.b16 %v756, %v755
        %v768 = vpack.c.b16 %v758, %v757
        %v769 = vpack.c.b16 %v760, %v759
        %v770 = vpack.c.b16 %v762, %v761
        %779 = vmatprep.subr.bf16.mxu0 0
        %780 = vmatpush1.bf16.msra.mxu0 %v763
        %781 = vmatprep.subr.bf16.mxu0 0
        %782 = vmatpush1.bf16.msra.mxu0 %v764
        %783 = vmatprep.subr.bf16.mxu0 0
        %784 = vmatpush1.bf16.msra.mxu0 %v765
        %785 = vmatprep.subr.bf16.mxu0 0
        %786 = vmatpush1.bf16.msra.mxu0 %v766
        %787 = vmatprep.subr.bf16.mxu0 0
        %788 = vmatpush1.bf16.msra.mxu0 %v767
        %789 = vmatprep.subr.bf16.mxu0 0
        %790 = vmatpush1.bf16.msra.mxu0 %v768
        %791 = vmatprep.subr.bf16.mxu0 0
        %792 = vmatpush1.bf16.msra.mxu0 %v769
        %793 = vmatprep.subr.bf16.mxu0 0
        %794 = vmatpush1.bf16.msra.mxu0 %v770
        %795 = vmatprep.subr.bf16.mxu0 0
        %796 = vmatpush1.bf16.msra.mxu0 0
        %797 = vmatprep.subr.bf16.mxu0 0
        %798 = vmatpush1.bf16.msra.mxu0 0
        %799 = vmatprep.subr.bf16.mxu0 0
        %800 = vmatpush1.bf16.msra.mxu0 0
        %801 = vmatprep.subr.bf16.mxu0 0
        %802 = vmatpush1.bf16.msra.mxu0 0
        %803 = vmatprep.subr.bf16.mxu0 0
        %804 = vmatpush1.bf16.msra.mxu0 0
        %805 = vmatprep.subr.bf16.mxu0 0
        %806 = vmatpush1.bf16.msra.mxu0 0
        %807 = vmatprep.subr.bf16.mxu0 0
        %808 = vmatpush1.bf16.msra.mxu0 0
        %809 = vmatprep.subr.bf16.mxu0 0
        %810 = vmatpush1.bf16.msra.mxu0 0
        %811 = vmatprep.mubr.bf16.mxu0 0
        %812 = vmatmul.mubr.bf16.gmra.mrb[0].mxu0 %v707
        %v813 = vpop.f32.mrb[0].mxu0
        %v814 = vadd.f32 %v729, %v813
        %v815 = vpop.f32.mrb[0].mxu0
        %v816 = vpop.f32.mrb[0].mxu0
        %v817 = vadd.f32 %v729, %v816
        %v818 = vpop.f32.mrb[0].mxu0
        %819 = vdwg.mxu0
        %vm820 = vcmp.ge.f32.partialorder %v814, 0.0
        %vm821 = vcmp.ge.f32.partialorder %v817, 0.0
        %v822 = vmul.f32 %v814, 0.2
        %v823 = vmul.f32 %v817, 0.2
        %v824 = vsel %vm820, %v814, %v822
        %v825 = vsel %vm821, %v817, %v823
        %v826 = vpack.c.bf16 %v825, %v824
        %v827 = vld [vmem:[#allocation14] sm:$0xf]
        %v828 = vld [vmem:[#allocation14 + $0x4] sm:$0xf]
        %v829 = vld [vmem:[#allocation14 + $0x8] sm:$0xf]
        %v830 = vld [vmem:[#allocation14 + $0xc] sm:$0xf]
        %v831 = vld [vmem:[#allocation14 + $0x10] sm:$0xf]
        %v832 = vld [vmem:[#allocation14 + $0x14] sm:$0xf]
        %v833 = vld [vmem:[#allocation14 + $0x18] sm:$0xf]
        %v834 = vld [vmem:[#allocation14 + $0x1c] sm:$0xf]
        %v835 = vld [vmem:[#allocation14 + $0x20] sm:$0xf]
        %v836 = vld [vmem:[#allocation14 + $0x24] sm:$0xf]
        %v837 = vld [vmem:[#allocation14 + $0x28] sm:$0xf]
        %v838 = vld [vmem:[#allocation14 + $0x2c] sm:$0xf]
        %v839 = vld [vmem:[#allocation14 + $0x30] sm:$0xf]
        %v840 = vld [vmem:[#allocation14 + $0x34] sm:$0xf]
        %v841 = vld [vmem:[#allocation14 + $0x38] sm:$0xf]
        %v842 = vld [vmem:[#allocation14 + $0x3c] sm:$0xf]
        %v843 = vld [vmem:[#allocation16] sm:$0x1]
        %v845 = vlaneseq
        %v846 = vshrl.u32 %v845, 7
        %v847 = vsub.s32 0, %v846
        %v848 = vrot.slane %v843, %v847
        %v866 = vunpack.c.l.b16 %v827
        %v867 = vunpack.c.l.b16 %v828
        %v868 = vunpack.c.l.b16 %v829
        %v869 = vunpack.c.l.b16 %v830
        %v870 = vunpack.c.l.b16 %v831
        %v871 = vunpack.c.l.b16 %v832
        %v872 = vunpack.c.l.b16 %v833
        %v873 = vunpack.c.l.b16 %v834
        %v874 = vunpack.c.l.b16 %v835
        %v875 = vunpack.c.l.b16 %v836
        %v876 = vunpack.c.l.b16 %v837
        %v877 = vunpack.c.l.b16 %v838
        %v878 = vunpack.c.l.b16 %v839
        %v879 = vunpack.c.l.b16 %v840
        %v880 = vunpack.c.l.b16 %v841
        %v881 = vunpack.c.l.b16 %v842
        %v882 = vpack.c.b16 %v867, %v866
        %v883 = vpack.c.b16 %v869, %v868
        %v884 = vpack.c.b16 %v871, %v870
        %v885 = vpack.c.b16 %v873, %v872
        %v886 = vpack.c.b16 %v875, %v874
        %v887 = vpack.c.b16 %v877, %v876
        %v888 = vpack.c.b16 %v879, %v878
        %v889 = vpack.c.b16 %v881, %v880
        %898 = vmatprep.subr.bf16.mxu0 0
        %899 = vmatpush1.bf16.msra.mxu0 %v882
        %900 = vmatprep.subr.bf16.mxu0 0
        %901 = vmatpush1.bf16.msra.mxu0 %v883
        %902 = vmatprep.subr.bf16.mxu0 0
        %903 = vmatpush1.bf16.msra.mxu0 %v884
        %904 = vmatprep.subr.bf16.mxu0 0
        %905 = vmatpush1.bf16.msra.mxu0 %v885
        %906 = vmatprep.subr.bf16.mxu0 0
        %907 = vmatpush1.bf16.msra.mxu0 %v886
        %908 = vmatprep.subr.bf16.mxu0 0
        %909 = vmatpush1.bf16.msra.mxu0 %v887
        %910 = vmatprep.subr.bf16.mxu0 0
        %911 = vmatpush1.bf16.msra.mxu0 %v888
        %912 = vmatprep.subr.bf16.mxu0 0
        %913 = vmatpush1.bf16.msra.mxu0 %v889
        %914 = vmatprep.subr.bf16.mxu0 0
        %915 = vmatpush1.bf16.msra.mxu0 0
        %916 = vmatprep.subr.bf16.mxu0 0
        %917 = vmatpush1.bf16.msra.mxu0 0
        %918 = vmatprep.subr.bf16.mxu0 0
        %919 = vmatpush1.bf16.msra.mxu0 0
        %920 = vmatprep.subr.bf16.mxu0 0
        %921 = vmatpush1.bf16.msra.mxu0 0
        %922 = vmatprep.subr.bf16.mxu0 0
        %923 = vmatpush1.bf16.msra.mxu0 0
        %924 = vmatprep.subr.bf16.mxu0 0
        %925 = vmatpush1.bf16.msra.mxu0 0
        %926 = vmatprep.subr.bf16.mxu0 0
        %927 = vmatpush1.bf16.msra.mxu0 0
        %928 = vmatprep.subr.bf16.mxu0 0
        %929 = vmatpush1.bf16.msra.mxu0 0
        %930 = vmatprep.mubr.bf16.mxu0 0
        %931 = vmatmul.mubr.bf16.gmra.mrb[0].mxu0 %v826
        %v932 = vpop.f32.mrb[0].mxu0
        %v933 = vadd.f32 %v848, %v932
        %v934 = vpop.f32.mrb[0].mxu0
        %v935 = vpop.f32.mrb[0].mxu0
        %v936 = vadd.f32 %v848, %v935
        %v937 = vpop.f32.mrb[0].mxu0
        %938 = vdwg.mxu0
        %939 = vst [vmem:[%s458] sm:$0xff] %v933
        %940 = vst [vmem:[%s458 + $0x8] sm:$0xff] %v936
        %s941 = sand.u32 %s232, 1
        %s942 = scalar_lea.sflag [#allocation4], %s941
        %s943 = sand.u32 %s232, 1
        %s944 = smul.addr %s943, 16
        %s945 = scalar_lea.vmem [#allocation17], %s944
        // Predicated region
        $region93: #{tpu_custom_call.1} parent=55 // pred_check
          %p946 = pneg %p242
        $region94: #{tpu_custom_call.1} parent=55 // pred_check_branch
          %948 = sbr.rel (%p946) target = $region96
        $region95: #{tpu_custom_call.1} parent=55 // pred_region
          %s949 = smul.u32 2, %s30
          %s951 = ssub.s32 256, 256
          %952 = vsyncadd %s942, %s951
          %s953 = smul.addr %s949, 128
          %s954 = scalar_lea.hbm %s9, %s953
          %s955 = sshll.u32 %s945, 4
          %s956 = int_to_ptr.vmem [resolvable:$true] %s955
          %961 = dma.vmem_to_hbm [thread:$0]  %s956, 256, %s954, %s942, 128, 128, 8
        $region96: #{tpu_custom_call.1} parent=55 // pred_fallthru
          _
      $region56: #{tpu_custom_call.1} parent=5 // pred_fallthru
        _
      %p962 = scmp.le.s32.totalorder 2, %s25
      // Predicated region
      $region97: #{tpu_custom_call.1} parent=5 // pred_check
        %p963 = pneg %p962
      $region98: #{tpu_custom_call.1} parent=5 // pred_check_branch
        %965 = sbr.rel (%p963) target = $region100
      $region99: #{tpu_custom_call.1} parent=5 // pred_region
        %s966 = ssub.s32 %s25, 2
        // Predicated region
        $region101: #{tpu_custom_call.1} parent=99 // pred_check
          %p967 = pneg %p248
        $region102: #{tpu_custom_call.1} parent=99 // pred_check_branch
          %969 = sbr.rel (%p967) target = $region104
        $region103: #{tpu_custom_call.1} parent=99 // pred_region
          %s970 = sand.u32 %s233, 1
          %s971 = scalar_lea.sflag [#allocation4], %s970
          %s972 = sand.u32 %s233, 1
          %s973 = smul.addr %s972, 16
          %s974 = scalar_lea.vmem [#allocation17], %s973
          %975 = dma.done %s971, 256
        $region104: #{tpu_custom_call.1} parent=99 // pred_fallthru
          _
      $region100: #{tpu_custom_call.1} parent=5 // pred_fallthru
        _
    $region6: #{tpu_custom_call.1} parent=1 // loop_footer
      %s29 = sadd.s32 1, %s25
    $region7: #{tpu_custom_call.1} parent=1 // loop_footer_branch
      %24 = sbr.rel target = $region3
    $region8: #{tpu_custom_call.1} parent=1 // loop_exit
      _
    %976 = vsyncpa [#allocation3], 1
    %s977 = scalar_lea.sflag [#allocation3], 1
    %978 = vsyncpa %s977, 1
    %979 = vsyncpa [#allocation6], 1
    %980 = vsyncpa [#allocation9], 1
    %981 = vsyncpa [#allocation12], 1
    %982 = vsyncpa [#allocation15], 1
    %983 = vsyncpa [#allocation4], 1
    %s984 = scalar_lea.sflag [#allocation4], 1
    %985 = vsyncpa %s984, 1

</llo_original>
